<compile_context>
chip_gen: v7x
topology: tpu7x:2x2x1
jax: 0.10.0
libtpu: 0.0.40
codegen_flags: <defaults>
</compile_context>

<pallas_src>
import functools

import numpy as np
import jax
import jax.numpy as jnp
from jax.experimental import pallas as pl
from jax.experimental.pallas import tpu as pltpu


# --------------------- deterministic parameter construction -----------------

def _hz_to_mel(hz):
    return 1127.01048 * np.log(np.asarray(hz, dtype=np.float64) / 700.0 + 1.0)


def _mel_to_hz(mel):
    return 700.0 * (np.exp(np.asarray(mel, dtype=np.float64) / 1127.01048) - 1.0)


def _round_up(x, m):
    return (x + m - 1) // m * m


def make_plp_constants(plp_order, n_channel, fft_length, sample_rate,
                       lifter=1, compression_factor=0.33,
                       f_min=0.0, f_max=None, floor=1e-5, n_fft=512):
    M, C = plp_order, n_channel
    assert 1 <= M < C
    if f_max is None:
        f_max = sample_rate / 2
    n_bin = fft_length // 2 + 1
    n_bin_pad = _round_up(n_bin, 128)
    m_pad = _round_up(M, 128)

    mel_min, mel_max = _hz_to_mel(f_min), _hz_to_mel(f_max)
    lower_bin = max(1, int(f_min / sample_rate * fft_length + 1.5))
    upper_bin = min(fft_length // 2, int(f_max / sample_rate * fft_length + 0.5))

    seed = np.arange(1, C + 2, dtype=np.float64)
    mel_centers = (mel_max - mel_min) / (C + 1) * seed + mel_min        # (C+1,)
    center_freq_hz = _mel_to_hz(mel_centers)                            # (C+1,)

    # SPTK/HTK-style triangular mel filter-bank weights, shape (n_bin, C)
    H = np.zeros((n_bin, C), dtype=np.float64)
    for i in range(lower_bin, upper_bin):
        mel_i = float(_hz_to_mel(sample_rate * i / fft_length))
        k = int(np.argmax(mel_i <= mel_centers))          # first edge >= mel_i
        left = mel_centers[k - 1] if k > 0 else mel_min
        w = (mel_centers[k] - mel_i) / (mel_centers[k] - left)
        if k > 0:
            H[i, k - 1] += w
        if k < C:
            H[i, k] += 1.0 - w

    # equal-loudness curve (Hermansky) on the first C center frequencies (Hz)
    f2 = center_freq_hz[:-1] ** 2
    eq = (f2 / (f2 + 160000.0)) ** 2 * (f2 + 1440000.0) / (f2 + 9610000.0)  # (C,) > 0

    # fold equal loudness into the filter bank; floor becomes per-channel.
    # valid because eq > 0:  max(x@H, floor) * eq == max(x@(H*eq), floor*eq)
    H_eq = H * eq[None, :]
    H_eq_pad = np.zeros((n_bin_pad, C), dtype=np.float64)
    H_eq_pad[:n_bin, :] = H_eq
    floor_eq = (floor * eq)[None, :]                                    # (1, C)

    # liftering vector
    m = np.arange(M + 1, dtype=np.float64)
    v = 1.0 + lifter / 2.0 * np.sin(np.pi / lifter * m)
    v[0] = 2.0

    # hfft(cat(p[:1], p, p[-1:]), norm='forward')[:M+1] as a (C, M+1) matmul
    n = 2 * (C + 1)
    cidx = np.arange(C, dtype=np.float64)[:, None]        # channel c -> position c+1
    kidx = np.arange(M + 1, dtype=np.float64)[None, :]
    A_ac = 2.0 * np.cos(2.0 * np.pi * (cidx + 1.0) * kidx / n)
    A_ac[0, :] += 1.0                                     # duplicated first element
    A_ac[C - 1, :] += (-1.0) ** np.arange(M + 1)          # duplicated last element
    A_ac /= n

    # fused forward DFT matrix for A(z) spectrum: rows m = 0..M (row 0 is the
    # leading "1" of A(z)), columns [cos | -sin] over n_fft frequencies.
    mm = np.arange(0, M + 1, dtype=np.float64)[:, None]   # (M+1, 1)
    kk = np.arange(n_fft, dtype=np.float64)[None, :]      # (1, n_fft)
    ang = 2.0 * np.pi * kk * mm / n_fft
    CS = np.concatenate([np.cos(ang), -np.sin(ang)], axis=1)   # (M+1, 2*n_fft)

    # inverse cosine DFT (cepstrum c_1..c_M) with the lifter folded in, padded
    # to 128 output lanes so the final store is lane-dense and unmasked.
    ang2 = 2.0 * np.pi * np.arange(n_fft, dtype=np.float64)[:, None] \
        * np.arange(1, M + 1, dtype=np.float64)[None, :] / n_fft
    D_lift = -np.cos(ang2) / n_fft * v[1:][None, :]            # (n_fft, M)
    D_lift_pad = np.zeros((n_fft, m_pad), dtype=np.float64)
    D_lift_pad[:, :M] = D_lift

    f32 = lambda a: np.asarray(a, dtype=np.float32)
    return dict(
        H_eq=f32(H_eq_pad), floor_eq=f32(floor_eq), A_ac=f32(A_ac),
        CS=f32(CS), D_lift=f32(D_lift_pad),
        cf=float(compression_factor),
        M=int(M), C=int(C), n_bin=int(n_bin), n_bin_pad=int(n_bin_pad),
        M_pad=int(m_pad), n_fft=int(n_fft),
    )


# ------------------------------- Pallas kernel -------------------------------

def _plp_kernel(x_ref, h_ref, floor_ref, ac_ref, cs_ref, d_ref, y_ref,
                *, M, n_fft, cf):
    x = x_ref[...]                                                       # (TB, NBpad)
    tb = x.shape[0]

    # 1. mel filter bank (equal loudness folded), per-channel floor, compression
    fb = jnp.dot(x, h_ref[...], preferred_element_type=jnp.float32)     # (TB, C)
    fb = jnp.maximum(fb, floor_ref[...])                                 # floor*eq
    p = jnp.exp(cf * jnp.log(fb))                                        # (fb*eq)**cf

    # 2. autocorrelation via mirrored hfft expressed as a cosine matmul
    r = jnp.dot(p, ac_ref[...], preferred_element_type=jnp.float32)     # (TB, M+1)

    # slice the M+1 autocorrelation lanes once
    rc = [r[:, j:j + 1] for j in range(M + 1)]                           # (TB, 1) each

    # 3. Levinson-Durbin, unrolled over the small fixed order M
    E = rc[0]
    a = {}
    for i in range(1, M + 1):
        acc = rc[i]
        for j in range(1, i):
            acc = acc + a[j] * rc[i - j]
        # EUP reciprocal (approx) frees VALU slots; E clamped to avoid Inf/NaN
        # on near-degenerate spectra.
        k = -acc * pl.reciprocal(jnp.maximum(E, 1e-30), approx=True)
        new_a = {j: a[j] + k * a[i - j] for j in range(1, i)}
        new_a[i] = k
        a = new_a
        E = E * (1.0 - k * k)
    # gain K = sqrt(E); its cepstral term (C0 = 2*log K) is dropped for 'y'.

    # A(z) coefficient row [1, a_1 .. a_M] via a cheap lane concat.
    ones = jnp.ones((tb, 1), jnp.float32)
    a_full = jnp.concatenate([ones] + [a[j] for j in range(1, M + 1)],
                             axis=1)                                     # (TB, M+1)

    # 4. cepstrum of 1/A(z): fused re/im spectrum, log power, inverse cosine
    #    DFT with lifter folded in (writes the padded output slab directly).
    reim = jnp.dot(a_full, cs_ref[...], preferred_element_type=jnp.float32)  # (TB, 2*n_fft)
    re = reim[:, :n_fft]
    im = reim[:, n_fft:]
    logmag2 = jnp.log(re * re + im * im + 1e-30)                         # (TB, n_fft)
    y_ref[...] = jnp.dot(logmag2, d_ref[...],
                         preferred_element_type=jnp.float32)             # (TB, Mpad)


# ------------------------------- host wrapper --------------------------------

def plp(x, consts, tb=256):
    B, n_bin = x.shape
    M, C = consts["M"], consts["C"]
    n_fft, nb_pad, m_pad = consts["n_fft"], consts["n_bin_pad"], consts["M_pad"]
    assert n_bin == consts["n_bin"]

    # choose effective frame tile; keep >= 2 grid steps when possible so the
    # v7x megacore can shard the "parallel" axis across its two TensorCores.
    tb_eff = min(tb, _round_up(B, 8))
    if _round_up(B, tb_eff) // tb_eff < 2 and tb_eff > 8:
        tb_eff = max(8, _round_up((B + 1) // 2, 8))
    B_pad = _round_up(B, tb_eff)

    # pad frequency lanes to a multiple of 128 and the frame axis to B_pad.
    # Pad value 1.0 is benign: the extra H rows are zero, and padded frames
    # are finite and sliced away below.
    x = jnp.pad(x, ((0, B_pad - B), (0, nb_pad - n_bin)), constant_values=1.0)

    kernel = functools.partial(_plp_kernel, M=M, n_fft=n_fft, cf=consts["cf"])

    flops_per_frame = 2 * (nb_pad * C + C * (M + 1)
                           + (M + 1) * 2 * n_fft + n_fft * m_pad)
    cost = pl.CostEstimate(
        flops=int(B_pad * flops_per_frame),
        transcendentals=int(B_pad * (2 * C + n_fft + M)),
        bytes_accessed=int(B_pad * nb_pad * 4 + B_pad * m_pad * 4),
    )

    def const_spec(shape):
        # same block every grid step -> stays resident in VMEM (no re-DMA)
        return pl.BlockSpec(shape, lambda i: (0, 0))

    y_pad = pl.pallas_call(
        kernel,
        out_shape=jax.ShapeDtypeStruct((B_pad, m_pad), jnp.float32),
        grid=(B_pad // tb_eff,),
        in_specs=[
            pl.BlockSpec((tb_eff, nb_pad), lambda i: (i, 0)),  # x, tiled over frames
            const_spec((nb_pad, C)),                           # H * eq (padded rows)
            const_spec((1, C)),                                # floor * eq
            const_spec((C, M + 1)),                            # hfft cosine matrix
            const_spec((M + 1, 2 * n_fft)),                    # fused [cos | -sin]
            const_spec((n_fft, m_pad)),                        # inv-DFT * lifter (padded)
        ],
        out_specs=pl.BlockSpec((tb_eff, m_pad), lambda i: (i, 0)),
        compiler_params=pltpu.CompilerParams(
            dimension_semantics=("parallel",)),
        cost_estimate=cost,
    )(x, consts["H_eq"], consts["floor_eq"], consts["A_ac"],
      consts["CS"], consts["D_lift"])

    return y_pad[:B, :M]


# ----------------------------------- main ------------------------------------

if __name__ == "__main__":
    PLP_ORDER, N_CHANNEL, FFT_LENGTH, SAMPLE_RATE = 4, 8, 32, 8000
    B = 16

    consts = make_plp_constants(PLP_ORDER, N_CHANNEL, FFT_LENGTH, SAMPLE_RATE)

    key = jax.random.PRNGKey(0)
    # synthetic power spectrum frames (strictly positive), shape (B, L/2+1)
    x = jax.random.uniform(key, (B, FFT_LENGTH // 2 + 1), dtype=jnp.float32,
                           minval=0.1, maxval=10.0)

    y = plp(x, consts)
    y = jax.block_until_ready(y)

    assert y.shape == (B, PLP_ORDER), y.shape
    assert bool(jnp.all(jnp.isfinite(y)))
    print("KERNEL_OK")
</pallas_src>

<mosaic_0001>
module attributes {stable_mosaic.version = 11 : i64} {
  func.func @_plp_kernel(%arg0: i32, %arg1: memref<8x128xf32, #tpu.memory_space<vmem>>, %arg2: memref<128x8xf32, #tpu.memory_space<vmem>>, %arg3: memref<1x8xf32, #tpu.memory_space<vmem>>, %arg4: memref<8x5xf32, #tpu.memory_space<vmem>>, %arg5: memref<5x1024xf32, #tpu.memory_space<vmem>>, %arg6: memref<512x128xf32, #tpu.memory_space<vmem>>, %arg7: memref<8x128xf32, #tpu.memory_space<vmem>>) attributes {dimension_semantics = [#tpu.dimension_semantics<parallel>], iteration_bounds = array<i64: 2>, scalar_prefetch = 0 : i64, scratch_operands = 0 : i64, tpu.core_type = #tpu.core_type<tc>, window_params = [{transform_indices = @transform_0, window_bounds = array<i64: 8, 128>}, {pipeline_mode = #tpu.pipeline_mode<synchronous>, transform_indices = @transform_1, window_bounds = array<i64: 128, 8>}, {pipeline_mode = #tpu.pipeline_mode<synchronous>, transform_indices = @transform_2, window_bounds = array<i64: 1, 8>}, {pipeline_mode = #tpu.pipeline_mode<synchronous>, transform_indices = @transform_3, window_bounds = array<i64: 8, 5>}, {pipeline_mode = #tpu.pipeline_mode<synchronous>, transform_indices = @transform_4, window_bounds = array<i64: 5, 1024>}, {pipeline_mode = #tpu.pipeline_mode<synchronous>, transform_indices = @transform_5, window_bounds = array<i64: 512, 128>}, {transform_indices = @transform_6, window_bounds = array<i64: 8, 128>}]} {
    %c0 = arith.constant 0 : index
    %c0_0 = arith.constant 0 : index
    %0 = vector.load %arg1[%c0, %c0_0] : memref<8x128xf32, #tpu.memory_space<vmem>>, vector<8x128xf32>
    %c0_1 = arith.constant 0 : index
    %c0_2 = arith.constant 0 : index
    %1 = vector.load %arg2[%c0_1, %c0_2] : memref<128x8xf32, #tpu.memory_space<vmem>>, vector<128x8xf32>
    %cst = arith.constant dense<0.000000e+00> : vector<8x8xf32>
    %2 = tpu.matmul %0, %1, %cst {dimension_numbers = #tpu.dot_dimension_numbers<[1], [0], [0], [1], [0, 0, 1, 1], [], []>} : vector<8x128xf32>, vector<128x8xf32>, vector<8x8xf32> -> vector<8x8xf32>
    %c0_3 = arith.constant 0 : index
    %c0_4 = arith.constant 0 : index
    %3 = vector.load %arg3[%c0_3, %c0_4] : memref<1x8xf32, #tpu.memory_space<vmem>>, vector<1x8xf32>
    %4 = vector.broadcast %3 : vector<1x8xf32> to vector<8x8xf32>
    %5 = arith.maximumf %2, %4 : vector<8x8xf32>
    %6 = math.log %5 : vector<8x8xf32>
    %cst_5 = arith.constant 3.300000e-01 : f32
    %7 = vector.broadcast %cst_5 : f32 to vector<8x8xf32>
    %8 = arith.mulf %7, %6 : vector<8x8xf32>
    %9 = math.exp %8 : vector<8x8xf32>
    %c0_6 = arith.constant 0 : index
    %c0_7 = arith.constant 0 : index
    %10 = vector.load %arg4[%c0_6, %c0_7] : memref<8x5xf32, #tpu.memory_space<vmem>>, vector<8x5xf32>
    %cst_8 = arith.constant dense<0.000000e+00> : vector<8x5xf32>
    %11 = tpu.matmul %9, %10, %cst_8 {dimension_numbers = #tpu.dot_dimension_numbers<[1], [0], [0], [1], [0, 0, 1, 1], [], []>} : vector<8x8xf32>, vector<8x5xf32>, vector<8x5xf32> -> vector<8x5xf32>
    %12 = vector.extract_strided_slice %11 {offsets = [0, 0], sizes = [8, 1], strides = [1, 1]} : vector<8x5xf32> to vector<8x1xf32>
    %13 = vector.extract_strided_slice %11 {offsets = [0, 1], sizes = [8, 1], strides = [1, 1]} : vector<8x5xf32> to vector<8x1xf32>
    %14 = vector.extract_strided_slice %11 {offsets = [0, 2], sizes = [8, 1], strides = [1, 1]} : vector<8x5xf32> to vector<8x1xf32>
    %15 = vector.extract_strided_slice %11 {offsets = [0, 3], sizes = [8, 1], strides = [1, 1]} : vector<8x5xf32> to vector<8x1xf32>
    %16 = vector.extract_strided_slice %11 {offsets = [0, 4], sizes = [8, 1], strides = [1, 1]} : vector<8x5xf32> to vector<8x1xf32>
    %cst_9 = arith.constant 0.000000e+00 : f32
    %17 = vector.broadcast %cst_9 : f32 to vector<8x1xf32>
    %18 = arith.subf %17, %13 : vector<8x1xf32>
    %cst_10 = arith.constant 1.000000e-30 : f32
    %19 = vector.broadcast %cst_10 : f32 to vector<8x1xf32>
    %20 = arith.maximumf %12, %19 : vector<8x1xf32>
    %21 = tpu.reciprocal %20 {approx = true} : vector<8x1xf32> -> vector<8x1xf32>
    %22 = arith.mulf %18, %21 : vector<8x1xf32>
    %23 = arith.mulf %22, %22 : vector<8x1xf32>
    %cst_11 = arith.constant 1.000000e+00 : f32
    %24 = vector.broadcast %cst_11 : f32 to vector<8x1xf32>
    %25 = arith.subf %24, %23 : vector<8x1xf32>
    %26 = arith.mulf %12, %25 : vector<8x1xf32>
    %27 = arith.mulf %22, %13 : vector<8x1xf32>
    %28 = arith.addf %14, %27 : vector<8x1xf32>
    %cst_12 = arith.constant 0.000000e+00 : f32
    %29 = vector.broadcast %cst_12 : f32 to vector<8x1xf32>
    %30 = arith.subf %29, %28 : vector<8x1xf32>
    %cst_13 = arith.constant 1.000000e-30 : f32
    %31 = vector.broadcast %cst_13 : f32 to vector<8x1xf32>
    %32 = arith.maximumf %26, %31 : vector<8x1xf32>
    %33 = tpu.reciprocal %32 {approx = true} : vector<8x1xf32> -> vector<8x1xf32>
    %34 = arith.mulf %30, %33 : vector<8x1xf32>
    %35 = arith.mulf %34, %22 : vector<8x1xf32>
    %36 = arith.addf %22, %35 : vector<8x1xf32>
    %37 = arith.mulf %34, %34 : vector<8x1xf32>
    %cst_14 = arith.constant 1.000000e+00 : f32
    %38 = vector.broadcast %cst_14 : f32 to vector<8x1xf32>
    %39 = arith.subf %38, %37 : vector<8x1xf32>
    %40 = arith.mulf %26, %39 : vector<8x1xf32>
    %41 = arith.mulf %36, %14 : vector<8x1xf32>
    %42 = arith.addf %15, %41 : vector<8x1xf32>
    %43 = arith.mulf %34, %13 : vector<8x1xf32>
    %44 = arith.addf %42, %43 : vector<8x1xf32>
    %cst_15 = arith.constant 0.000000e+00 : f32
    %45 = vector.broadcast %cst_15 : f32 to vector<8x1xf32>
    %46 = arith.subf %45, %44 : vector<8x1xf32>
    %cst_16 = arith.constant 1.000000e-30 : f32
    %47 = vector.broadcast %cst_16 : f32 to vector<8x1xf32>
    %48 = arith.maximumf %40, %47 : vector<8x1xf32>
    %49 = tpu.reciprocal %48 {approx = true} : vector<8x1xf32> -> vector<8x1xf32>
    %50 = arith.mulf %46, %49 : vector<8x1xf32>
    %51 = arith.mulf %50, %34 : vector<8x1xf32>
    %52 = arith.addf %36, %51 : vector<8x1xf32>
    %53 = arith.mulf %50, %36 : vector<8x1xf32>
    %54 = arith.addf %34, %53 : vector<8x1xf32>
    %55 = arith.mulf %50, %50 : vector<8x1xf32>
    %cst_17 = arith.constant 1.000000e+00 : f32
    %56 = vector.broadcast %cst_17 : f32 to vector<8x1xf32>
    %57 = arith.subf %56, %55 : vector<8x1xf32>
    %58 = arith.mulf %40, %57 : vector<8x1xf32>
    %59 = arith.mulf %52, %15 : vector<8x1xf32>
    %60 = arith.addf %16, %59 : vector<8x1xf32>
    %61 = arith.mulf %54, %14 : vector<8x1xf32>
    %62 = arith.addf %60, %61 : vector<8x1xf32>
    %63 = arith.mulf %50, %13 : vector<8x1xf32>
    %64 = arith.addf %62, %63 : vector<8x1xf32>
    %cst_18 = arith.constant 0.000000e+00 : f32
    %65 = vector.broadcast %cst_18 : f32 to vector<8x1xf32>
    %66 = arith.subf %65, %64 : vector<8x1xf32>
    %cst_19 = arith.constant 1.000000e-30 : f32
    %67 = vector.broadcast %cst_19 : f32 to vector<8x1xf32>
    %68 = arith.maximumf %58, %67 : vector<8x1xf32>
    %69 = tpu.reciprocal %68 {approx = true} : vector<8x1xf32> -> vector<8x1xf32>
    %70 = arith.mulf %66, %69 : vector<8x1xf32>
    %71 = arith.mulf %70, %50 : vector<8x1xf32>
    %72 = arith.addf %52, %71 : vector<8x1xf32>
    %73 = arith.mulf %70, %54 : vector<8x1xf32>
    %74 = arith.addf %54, %73 : vector<8x1xf32>
    %75 = arith.mulf %70, %52 : vector<8x1xf32>
    %76 = arith.addf %50, %75 : vector<8x1xf32>
    %cst_20 = arith.constant 1.000000e+00 : f32
    %77 = vector.broadcast %cst_20 : f32 to vector<8x1xf32>
    %78 = tpu.concatenate %77, %72, %74, %76, %70 in 1 : vector<8x1xf32>, vector<8x1xf32>, vector<8x1xf32>, vector<8x1xf32>, vector<8x1xf32> -> vector<8x5xf32>
    %c0_21 = arith.constant 0 : index
    %c0_22 = arith.constant 0 : index
    %79 = vector.load %arg5[%c0_21, %c0_22] : memref<5x1024xf32, #tpu.memory_space<vmem>>, vector<5x1024xf32>
    %cst_23 = arith.constant dense<0.000000e+00> : vector<8x1024xf32>
    %80 = tpu.matmul %78, %79, %cst_23 {dimension_numbers = #tpu.dot_dimension_numbers<[1], [0], [0], [1], [0, 0, 1, 1], [], []>} : vector<8x5xf32>, vector<5x1024xf32>, vector<8x1024xf32> -> vector<8x1024xf32>
    %81 = vector.extract_strided_slice %80 {offsets = [0, 0], sizes = [8, 512], strides = [1, 1]} : vector<8x1024xf32> to vector<8x512xf32>
    %82 = vector.extract_strided_slice %80 {offsets = [0, 512], sizes = [8, 512], strides = [1, 1]} : vector<8x1024xf32> to vector<8x512xf32>
    %83 = arith.mulf %81, %81 : vector<8x512xf32>
    %84 = arith.mulf %82, %82 : vector<8x512xf32>
    %85 = arith.addf %83, %84 : vector<8x512xf32>
    %cst_24 = arith.constant 1.000000e-30 : f32
    %86 = vector.broadcast %cst_24 : f32 to vector<8x512xf32>
    %87 = arith.addf %85, %86 : vector<8x512xf32>
    %88 = math.log %87 : vector<8x512xf32>
    %c0_25 = arith.constant 0 : index
    %c0_26 = arith.constant 0 : index
    %89 = vector.load %arg6[%c0_25, %c0_26] : memref<512x128xf32, #tpu.memory_space<vmem>>, vector<512x128xf32>
    %cst_27 = arith.constant dense<0.000000e+00> : vector<8x128xf32>
    %90 = tpu.matmul %88, %89, %cst_27 {dimension_numbers = #tpu.dot_dimension_numbers<[1], [0], [0], [1], [0, 0, 1, 1], [], []>} : vector<8x512xf32>, vector<512x128xf32>, vector<8x128xf32> -> vector<8x128xf32>
    %c0_28 = arith.constant 0 : index
    %c0_29 = arith.constant 0 : index
    %91 = vector.load %arg7[%c0_28, %c0_29] : memref<8x128xf32, #tpu.memory_space<vmem>>, vector<8x128xf32>
    tpu.vector_store %arg7[%c0_28, %c0_29], %90 {strides = array<i32>} : memref<8x128xf32, #tpu.memory_space<vmem>>, vector<8x128xf32>,
    return
  }
  func.func @transform_0(%arg0: i32) -> (i32, i32) {
    %c0_i32 = arith.constant 0 : i32
    %c0_i32_0 = arith.constant 0 : i32
    return %arg0, %c0_i32 : i32, i32
  }
  func.func @transform_1(%arg0: i32) -> (i32, i32) {
    %c0_i32 = arith.constant 0 : i32
    %c0_i32_0 = arith.constant 0 : i32
    %c0_i32_1 = arith.constant 0 : i32
    return %c0_i32, %c0_i32_0 : i32, i32
  }
  func.func @transform_2(%arg0: i32) -> (i32, i32) {
    %c0_i32 = arith.constant 0 : i32
    %c0_i32_0 = arith.constant 0 : i32
    %c0_i32_1 = arith.constant 0 : i32
    return %c0_i32, %c0_i32_0 : i32, i32
  }
  func.func @transform_3(%arg0: i32) -> (i32, i32) {
    %c0_i32 = arith.constant 0 : i32
    %c0_i32_0 = arith.constant 0 : i32
    %c0_i32_1 = arith.constant 0 : i32
    return %c0_i32, %c0_i32_0 : i32, i32
  }
  func.func @transform_4(%arg0: i32) -> (i32, i32) {
    %c0_i32 = arith.constant 0 : i32
    %c0_i32_0 = arith.constant 0 : i32
    %c0_i32_1 = arith.constant 0 : i32
    return %c0_i32, %c0_i32_0 : i32, i32
  }
  func.func @transform_5(%arg0: i32) -> (i32, i32) {
    %c0_i32 = arith.constant 0 : i32
    %c0_i32_0 = arith.constant 0 : i32
    %c0_i32_1 = arith.constant 0 : i32
    return %c0_i32, %c0_i32_0 : i32, i32
  }
  func.func @transform_6(%arg0: i32) -> (i32, i32) {
    %c0_i32 = arith.constant 0 : i32
    %c0_i32_0 = arith.constant 0 : i32
    return %arg0, %c0_i32 : i32, i32
  }
}

</mosaic_0001>

<llo_original>
// kernel: tpu_custom_call.1
$region0: #{tpu_custom_call.1}
  #allocation0 [shape = 'u32[]', space=smem, size = 0x4, offset = 0x4, fixed_abs, tag = 'smem constant byte address 0x4 - core index']
  #allocation1 [shape = 'u32[144,128]{1,0:T(1,128)}', space=vmem, size = 0x12000, scoped, tag = 'internal scratch']
  %s0 = inlined_call_operand.vmem [shape: f32[16,128], index: 0, kind: input, shape index: {}]
  %s1 = inlined_call_operand.vmem [shape: f32[128,8], index: 1, kind: input, shape index: {}]
  %s2 = inlined_call_operand.vmem [shape: f32[1,8], index: 2, kind: input, shape index: {}]
  %s3 = inlined_call_operand.vmem [shape: f32[8,5], index: 3, kind: input, shape index: {}]
  %s4 = inlined_call_operand.vmem [shape: f32[5,1024], index: 4, kind: input, shape index: {}]
  %s5 = inlined_call_operand.hbm [shape: f32[512,128], index: 5, kind: input, shape index: {}]
  %s6 = inlined_call_operand.hbm [shape: f32[16,128], index: 6, kind: output, shape index: {}]
  %s7 = sld [smem:[#allocation0]]
  $region61: #{tpu_custom_call.1} parent=0
    _
  %s9 = ssub.s32 1, %s7
  %s10 = scalar_select 0, %s9, %s7
  $region1: #{tpu_custom_call.1} parent=0
    #allocation2 [shape = 'u8[262144]{0}', space=vmem, size = 0x40000, scoped, tag = 'input window, operand 5, single buffered']
    #allocation3 [shape = 's32[2]{0}', space=sflag, size = 0x8, scoped, tag = 'scoped memory for tpu_custom_call.1']
    #allocation4 [shape = 's32[2]{0}', space=sflag, size = 0x8, scoped, tag = 'scoped memory for tpu_custom_call.1']
    #allocation5 [shape = 'u8[8192]{0}', space=vmem, size = 0x2000, scoped, tag = 'output window, operand 0']
    %11 = vsyncpa [#allocation3], 0
    %12 = vsyncpa [#allocation4], 0
    %s13 = scalar_lea.sflag [#allocation4], 1
    %14 = vsyncpa %s13, 0
    loop: start=0, step=1, limit=4
    $region2: #{tpu_custom_call.1} parent=1 // loop_pre_header
      _
    $region3: #{tpu_custom_call.1} parent=1 // loop_header
      %s16 = sphi 0, %s20
      %p17 = scmp.ge.s32.totalorder %s16, 4
      %s26 = sphi 0, %s28
      %s29 = sphi 0, %s26
      %s30 = sphi 0, %s29
      %s46 = sphi 0, %s30
      %s50 = sphi 0, %s50
      %s52 = sphi 0, %s50
      %s53 = sphi 0, %s52
      %s67 = sphi 0, %s53
      %s71 = sphi 0, %s71
      %s73 = sphi 0, %s71
      %s74 = sphi 0, %s73
      %s88 = sphi 0, %s74
      %s92 = sphi 0, %s92
      %s94 = sphi 0, %s92
      %s95 = sphi 0, %s94
      %s109 = sphi 0, %s95
      %s113 = sphi 0, %s113
      %s115 = sphi 0, %s113
      %s116 = sphi 0, %s115
      %s130 = sphi 0, %s116
      %s134 = sphi 0, %s134
      %s136 = sphi 0, %s134
      %s137 = sphi 0, %s136
      %s151 = sphi 0, %s137
      %s157 = sphi 0, %s159
      %s160 = sphi 0, %s157
      %s161 = sphi 0, %s160
      %s177 = sphi 0, %s161
    $region4: #{tpu_custom_call.1} parent=1 // loop_header_branch
      %19 = sbr.rel (%p17) target = $region8
    $region5: #{tpu_custom_call.1} parent=1 // loop_body
      %s21 = ssub.s32 %s16, 1
      %s22 = ssub.s32 %s16, 2
      %s23 = sadd.s32 %s16, 1
      %s24 = ssub.s32 %s16, %s23
      %p25 = scmp.eq.s32.totalorder %s24, 0
      %s27 = sadd.s32 %s26, 1
      %s28 = scalar_select %p25, %s26, %s27
      %p31 = pneg %p25
      %p32 = scmp.eq.s32.totalorder %s16, 1
      %p33 = por %p31, %p32
      %p34 = scmp.ne.s32.totalorder %s26, %s29
      %p35 = scmp.eq.s32.totalorder %s16, 0
      %p36 = por %p34, %p35
      %p37 = scmp.ne.s32.totalorder %s26, %s29
      %p38 = scmp.eq.s32.totalorder %s21, 1
      %p39 = por %p37, %p38
      %p40 = scmp.ne.s32.totalorder %s29, %s30
      %p41 = scmp.eq.s32.totalorder %s21, 0
      %p42 = por %p40, %p41
      %p43 = scmp.ne.s32.totalorder %s29, %s30
      %p44 = scmp.eq.s32.totalorder %s22, 1
      %p45 = por %p43, %p44
      %p47 = scmp.ne.s32.totalorder %s30, %s46
      %p48 = scmp.eq.s32.totalorder %s22, 0
      %p49 = por %p47, %p48
      %s51 = sadd.s32 %s50, 1
      %p54 = scmp.eq.s32.totalorder %s16, 1
      %p55 = scmp.ne.s32.totalorder %s50, %s52
      %p56 = scmp.eq.s32.totalorder %s16, 0
      %p57 = por %p55, %p56
      %p58 = scmp.ne.s32.totalorder %s50, %s52
      %p59 = scmp.eq.s32.totalorder %s21, 1
      %p60 = por %p58, %p59
      %p61 = scmp.ne.s32.totalorder %s52, %s53
      %p62 = scmp.eq.s32.totalorder %s21, 0
      %p63 = por %p61, %p62
      %p64 = scmp.ne.s32.totalorder %s52, %s53
      %p65 = scmp.eq.s32.totalorder %s22, 1
      %p66 = por %p64, %p65
      %p68 = scmp.ne.s32.totalorder %s53, %s67
      %p69 = scmp.eq.s32.totalorder %s22, 0
      %p70 = por %p68, %p69
      %s72 = sadd.s32 %s71, 1
      %p75 = scmp.eq.s32.totalorder %s16, 1
      %p76 = scmp.ne.s32.totalorder %s71, %s73
      %p77 = scmp.eq.s32.totalorder %s16, 0
      %p78 = por %p76, %p77
      %p79 = scmp.ne.s32.totalorder %s71, %s73
      %p80 = scmp.eq.s32.totalorder %s21, 1
      %p81 = por %p79, %p80
      %p82 = scmp.ne.s32.totalorder %s73, %s74
      %p83 = scmp.eq.s32.totalorder %s21, 0
      %p84 = por %p82, %p83
      %p85 = scmp.ne.s32.totalorder %s73, %s74
      %p86 = scmp.eq.s32.totalorder %s22, 1
      %p87 = por %p85, %p86
      %p89 = scmp.ne.s32.totalorder %s74, %s88
      %p90 = scmp.eq.s32.totalorder %s22, 0
      %p91 = por %p89, %p90
      %s93 = sadd.s32 %s92, 1
      %p96 = scmp.eq.s32.totalorder %s16, 1
      %p97 = scmp.ne.s32.totalorder %s92, %s94
      %p98 = scmp.eq.s32.totalorder %s16, 0
      %p99 = por %p97, %p98
      %p100 = scmp.ne.s32.totalorder %s92, %s94
      %p101 = scmp.eq.s32.totalorder %s21, 1
      %p102 = por %p100, %p101
      %p103 = scmp.ne.s32.totalorder %s94, %s95
      %p104 = scmp.eq.s32.totalorder %s21, 0
      %p105 = por %p103, %p104
      %p106 = scmp.ne.s32.totalorder %s94, %s95
      %p107 = scmp.eq.s32.totalorder %s22, 1
      %p108 = por %p106, %p107
      %p110 = scmp.ne.s32.totalorder %s95, %s109
      %p111 = scmp.eq.s32.totalorder %s22, 0
      %p112 = por %p110, %p111
      %s114 = sadd.s32 %s113, 1
      %p117 = scmp.eq.s32.totalorder %s16, 1
      %p118 = scmp.ne.s32.totalorder %s113, %s115
      %p119 = scmp.eq.s32.totalorder %s16, 0
      %p120 = por %p118, %p119
      %p121 = scmp.ne.s32.totalorder %s113, %s115
      %p122 = scmp.eq.s32.totalorder %s21, 1
      %p123 = por %p121, %p122
      %p124 = scmp.ne.s32.totalorder %s115, %s116
      %p125 = scmp.eq.s32.totalorder %s21, 0
      %p126 = por %p124, %p125
      %p127 = scmp.ne.s32.totalorder %s115, %s116
      %p128 = scmp.eq.s32.totalorder %s22, 1
      %p129 = por %p127, %p128
      %p131 = scmp.ne.s32.totalorder %s116, %s130
      %p132 = scmp.eq.s32.totalorder %s22, 0
      %p133 = por %p131, %p132
      %s135 = sadd.s32 %s134, 1
      %p138 = scmp.eq.s32.totalorder %s16, 1
      %p139 = scmp.ne.s32.totalorder %s134, %s136
      %p140 = scmp.eq.s32.totalorder %s16, 0
      %p141 = por %p139, %p140
      %p142 = scmp.ne.s32.totalorder %s134, %s136
      %p143 = scmp.eq.s32.totalorder %s21, 1
      %p144 = por %p142, %p143
      %p145 = scmp.ne.s32.totalorder %s136, %s137
      %p146 = scmp.eq.s32.totalorder %s21, 0
      %p147 = por %p145, %p146
      %p148 = scmp.ne.s32.totalorder %s136, %s137
      %p149 = scmp.eq.s32.totalorder %s22, 1
      %p150 = por %p148, %p149
      %p152 = scmp.ne.s32.totalorder %s137, %s151
      %p153 = scmp.eq.s32.totalorder %s22, 0
      %p154 = por %p152, %p153
      %s155 = ssub.s32 %s16, %s23
      %p156 = scmp.eq.s32.totalorder %s155, 0
      %s158 = sadd.s32 %s157, 1
      %s159 = scalar_select %p156, %s157, %s158
      %p162 = pneg %p156
      %p163 = scmp.eq.s32.totalorder %s16, 1
      %p164 = por %p162, %p163
      %p165 = scmp.ne.s32.totalorder %s157, %s160
      %p166 = scmp.eq.s32.totalorder %s16, 0
      %p167 = por %p165, %p166
      %p168 = scmp.ne.s32.totalorder %s157, %s160
      %p169 = scmp.eq.s32.totalorder %s21, 1
      %p170 = por %p168, %p169
      %p171 = scmp.ne.s32.totalorder %s160, %s161
      %p172 = scmp.eq.s32.totalorder %s21, 0
      %p173 = por %p171, %p172
      %p174 = scmp.ne.s32.totalorder %s160, %s161
      %p175 = scmp.eq.s32.totalorder %s22, 1
      %p176 = por %p174, %p175
      %p178 = scmp.ne.s32.totalorder %s161, %s177
      %p179 = scmp.eq.s32.totalorder %s22, 0
      %p180 = por %p178, %p179
      %p181 = scmp.le.s32.totalorder 1, %s16
      %p182 = scmp.lt.s32.totalorder %s16, 3
      %p183 = pnand %p181, %p182
      %p184 = pneg %p183
      // Predicated region
      $region9: #{tpu_custom_call.1} parent=5 // pred_check
        _
      $region10: #{tpu_custom_call.1} parent=5 // pred_check_branch
        %186 = sbr.rel (%p183) target = $region12
      $region11: #{tpu_custom_call.1} parent=5 // pred_region
        %s187 = ssub.s32 %s16, 1
        // Predicated region
        $region13: #{tpu_custom_call.1} parent=11 // pred_check
          %p188 = pneg %p63
        $region14: #{tpu_custom_call.1} parent=11 // pred_check_branch
          %190 = sbr.rel (%p188) target = $region16
        $region15: #{tpu_custom_call.1} parent=11 // pred_region
          _
        $region16: #{tpu_custom_call.1} parent=11 // pred_fallthru
          _
        // Predicated region
        $region17: #{tpu_custom_call.1} parent=11 // pred_check
          %p191 = pneg %p84
        $region18: #{tpu_custom_call.1} parent=11 // pred_check_branch
          %193 = sbr.rel (%p191) target = $region20
        $region19: #{tpu_custom_call.1} parent=11 // pred_region
          _
        $region20: #{tpu_custom_call.1} parent=11 // pred_fallthru
          _
        // Predicated region
        $region21: #{tpu_custom_call.1} parent=11 // pred_check
          %p194 = pneg %p105
        $region22: #{tpu_custom_call.1} parent=11 // pred_check_branch
          %196 = sbr.rel (%p194) target = $region24
        $region23: #{tpu_custom_call.1} parent=11 // pred_region
          _
        $region24: #{tpu_custom_call.1} parent=11 // pred_fallthru
          _
        // Predicated region
        $region25: #{tpu_custom_call.1} parent=11 // pred_check
          %p197 = pneg %p126
        $region26: #{tpu_custom_call.1} parent=11 // pred_check_branch
          %199 = sbr.rel (%p197) target = $region28
        $region27: #{tpu_custom_call.1} parent=11 // pred_region
          _
        $region28: #{tpu_custom_call.1} parent=11 // pred_fallthru
          _
        // Predicated region
        $region29: #{tpu_custom_call.1} parent=11 // pred_check
          %p200 = pneg %p147
        $region30: #{tpu_custom_call.1} parent=11 // pred_check_branch
          %202 = sbr.rel (%p200) target = $region32
        $region31: #{tpu_custom_call.1} parent=11 // pred_region
          %s204 = ssub.s32 8192, 8192
          %205 = vsyncadd [#allocation3], %s204
          %s206 = sshll.u32 [#allocation2], 4
          %s207 = int_to_ptr.vmem [resolvable:$true] %s206
          %212 = dma.hbm_to_vmem [thread:$0]  %s5, 8192, %s207, [#allocation3], 128, 128, 8
        $region32: #{tpu_custom_call.1} parent=11 // pred_fallthru
          _
      $region12: #{tpu_custom_call.1} parent=5 // pred_fallthru
        _
      %p213 = scmp.lt.s32.totalorder %s16, 2
      // Predicated region
      $region33: #{tpu_custom_call.1} parent=5 // pred_check
        %p214 = pneg %p213
      $region34: #{tpu_custom_call.1} parent=5 // pred_check_branch
        %216 = sbr.rel (%p214) target = $region36
      $region35: #{tpu_custom_call.1} parent=5 // pred_region
        // Predicated region
        $region37: #{tpu_custom_call.1} parent=35 // pred_check
          %p217 = pneg %p36
        $region38: #{tpu_custom_call.1} parent=35 // pred_check_branch
          %219 = sbr.rel (%p217) target = $region40
        $region39: #{tpu_custom_call.1} parent=35 // pred_region
          %p220 = scmp.lt.s32.totalorder %s16, 1
          %s221 = scalar_select %p220, %s16, 1
          %s222 = smul.addr %s221, 8
          %s223 = scalar_lea.vmem %s0, %s222
        $region40: #{tpu_custom_call.1} parent=35 // pred_fallthru
          _
      $region36: #{tpu_custom_call.1} parent=5 // pred_fallthru
        _
      %p224 = scmp.le.s32.totalorder 1, %s16
      %p225 = scmp.lt.s32.totalorder %s16, 3
      %p226 = pnand %p224, %p225
      %p227 = pneg %p226
      // Predicated region
      $region41: #{tpu_custom_call.1} parent=5 // pred_check
        _
      $region42: #{tpu_custom_call.1} parent=5 // pred_check_branch
        %229 = sbr.rel (%p226) target = $region44
      $region43: #{tpu_custom_call.1} parent=5 // pred_region
        %s230 = ssub.s32 %s16, 1
        // Predicated region
        $region45: #{tpu_custom_call.1} parent=43 // pred_check
          %p231 = pneg %p147
        $region46: #{tpu_custom_call.1} parent=43 // pred_check_branch
          %233 = sbr.rel (%p231) target = $region48
        $region47: #{tpu_custom_call.1} parent=43 // pred_region
          %234 = dma.done [#allocation3], 8192
        $region48: #{tpu_custom_call.1} parent=43 // pred_fallthru
          _
        %p235 = scmp.lt.s32.totalorder %s21, 1
        %s236 = scalar_select %p235, %s21, 1
        %s237 = smul.addr %s236, 8
        %s238 = scalar_lea.vmem %s0, %s237
        %p239 = pneg %p42
        %p240 = pneg %p39
        %p241 = pneg %p63
        %p242 = pneg %p60
        %p243 = pneg %p84
        %p244 = pneg %p81
        %p245 = pneg %p105
        %p246 = pneg %p102
        %p247 = pneg %p126
        %p248 = pneg %p123
        %p249 = pneg %p147
        %p250 = pneg %p144
        %p251 = pneg %p173
        %p252 = pneg %p170
        %s253 = sand.u32 %s160, 1
        %s254 = scalar_lea.sflag [#allocation4], %s253
        %s255 = sand.u32 %s160, 1
        %s256 = smul.addr %s255, 8
        %s257 = scalar_lea.vmem [#allocation5], %s256
        %p258 = scmp.lt.s32.totalorder %s21, 1
        %s259 = scalar_select %p258, %s21, 1
        %s260 = smul.addr %s259, 8
        %s261 = scalar_lea.vmem %s0, %s260
        %v262 = vld [vmem:[%s261] sm:$0xff]
        %v263 = vld [vmem:[%s1] sm:$0xff]
        %v264 = vld [vmem:[%s1 + $0x8] sm:$0xff]
        %v265 = vld [vmem:[%s1 + $0x10] sm:$0xff]
        %v266 = vld [vmem:[%s1 + $0x18] sm:$0xff]
        %v267 = vld [vmem:[%s1 + $0x20] sm:$0xff]
        %v268 = vld [vmem:[%s1 + $0x28] sm:$0xff]
        %v269 = vld [vmem:[%s1 + $0x30] sm:$0xff]
        %v270 = vld [vmem:[%s1 + $0x38] sm:$0xff]
        %v271 = vld [vmem:[%s1 + $0x40] sm:$0xff]
        %v272 = vld [vmem:[%s1 + $0x48] sm:$0xff]
        %v273 = vld [vmem:[%s1 + $0x50] sm:$0xff]
        %v274 = vld [vmem:[%s1 + $0x58] sm:$0xff]
        %v275 = vld [vmem:[%s1 + $0x60] sm:$0xff]
        %v276 = vld [vmem:[%s1 + $0x68] sm:$0xff]
        %v277 = vld [vmem:[%s1 + $0x70] sm:$0xff]
        %v278 = vld [vmem:[%s1 + $0x78] sm:$0xff]
        %279 = vmatprep.subr.mxu0 0.0
        %280 = vmatpush1.msra.mxu0 %v263
        %281 = vmatprep.subr.mxu0 0.0
        %282 = vmatpush1.msra.mxu0 %v264
        %283 = vmatprep.subr.mxu0 0.0
        %284 = vmatpush1.msra.mxu0 %v265
        %285 = vmatprep.subr.mxu0 0.0
        %286 = vmatpush1.msra.mxu0 %v266
        %287 = vmatprep.subr.mxu0 0.0
        %288 = vmatpush1.msra.mxu0 %v267
        %289 = vmatprep.subr.mxu0 0.0
        %290 = vmatpush1.msra.mxu0 %v268
        %291 = vmatprep.subr.mxu0 0.0
        %292 = vmatpush1.msra.mxu0 %v269
        %293 = vmatprep.subr.mxu0 0.0
        %294 = vmatpush1.msra.mxu0 %v270
        %295 = vmatprep.subr.mxu0 0.0
        %296 = vmatpush1.msra.mxu0 %v271
        %297 = vmatprep.subr.mxu0 0.0
        %298 = vmatpush1.msra.mxu0 %v272
        %299 = vmatprep.subr.mxu0 0.0
        %300 = vmatpush1.msra.mxu0 %v273
        %301 = vmatprep.subr.mxu0 0.0
        %302 = vmatpush1.msra.mxu0 %v274
        %303 = vmatprep.subr.mxu0 0.0
        %304 = vmatpush1.msra.mxu0 %v275
        %305 = vmatprep.subr.mxu0 0.0
        %306 = vmatpush1.msra.mxu0 %v276
        %307 = vmatprep.subr.mxu0 0.0
        %308 = vmatpush1.msra.mxu0 %v277
        %309 = vmatprep.subr.mxu0 0.0
        %310 = vmatpush1.msra.mxu0 %v278
        %311 = vmatprep.subr.mxu0 0.0
        %312 = vmatpush1.msra.mxu0 0.0
        %313 = vmatprep.subr.mxu0 0.0
        %314 = vmatpush1.msra.mxu0 0.0
        %315 = vmatprep.subr.mxu0 0.0
        %316 = vmatpush1.msra.mxu0 0.0
        %317 = vmatprep.subr.mxu0 0.0
        %318 = vmatpush1.msra.mxu0 0.0
        %319 = vmatprep.subr.mxu0 0.0
        %320 = vmatpush1.msra.mxu0 0.0
        %321 = vmatprep.subr.mxu0 0.0
        %322 = vmatpush1.msra.mxu0 0.0
        %323 = vmatprep.subr.mxu0 0.0
        %324 = vmatpush1.msra.mxu0 0.0
        %325 = vmatprep.subr.mxu0 0.0
        %326 = vmatpush1.msra.mxu0 0.0
        %327 = vmatprep.subr.mxu0 0.0
        %328 = vmatpush1.msra.mxu0 0.0
        %329 = vmatprep.subr.mxu0 0.0
        %330 = vmatpush1.msra.mxu0 0.0
        %331 = vmatprep.subr.mxu0 0.0
        %332 = vmatpush1.msra.mxu0 0.0
        %333 = vmatprep.subr.mxu0 0.0
        %334 = vmatpush1.msra.mxu0 0.0
        %335 = vmatprep.subr.mxu0 0.0
        %336 = vmatpush1.msra.mxu0 0.0
        %337 = vmatprep.subr.mxu0 0.0
        %338 = vmatpush1.msra.mxu0 0.0
        %339 = vmatprep.subr.mxu0 0.0
        %340 = vmatpush1.msra.mxu0 0.0
        %341 = vmatprep.subr.mxu0 0.0
        %342 = vmatpush1.msra.mxu0 0.0
        %343 = vmatprep.mubr.f32.mxu0 0.0
        %344 = vmatmul.mubr.f32.gmra.mrb[0].mxu0 %v262
        %v345 = vpop.f32.mrb[0].mxu0
        %v346 = vadd.f32 0.0, %v345
        %v347 = vpop.f32.mrb[0].mxu0
        %348 = vdwg.mxu0
        %v349 = vld [vmem:[%s2] sm:$0x1]
        %v351 = vlaneseq
        %v352 = vshrl.u32 %v351, 7
        %v353 = vsub.s32 0, %v352
        %v354 = vrot.slane %v349, %v353
        %v356 = vmax.f32 %v346, %v354
        %v357 = vlog2.pop %v356
        %v358 = vmul.f32 %v357, 0.6931472
        %v359 = vmul.f32 %v358, 0.33
        %v360 = vmul.f32 %v359, 1.442695
        %v361 = vpow.pop %v360
        %v362 = vld [vmem:[%s3] sm:$0xff]
        %vm363 = vcmask 64512
        %v365 = vsel %vm363, %v361, 0
        %367 = vmatprep.subr.mxu0 0.0
        %368 = vmatpush1.msra.mxu0 %v362
        %369 = vmatprep.subr.mxu0 0.0
        %370 = vmatpush1.msra.mxu0 0.0
        %371 = vmatprep.subr.mxu0 0.0
        %372 = vmatpush1.msra.mxu0 0.0
        %373 = vmatprep.subr.mxu0 0.0
        %374 = vmatpush1.msra.mxu0 0.0
        %375 = vmatprep.subr.mxu0 0.0
        %376 = vmatpush1.msra.mxu0 0.0
        %377 = vmatprep.subr.mxu0 0.0
        %378 = vmatpush1.msra.mxu0 0.0
        %379 = vmatprep.subr.mxu0 0.0
        %380 = vmatpush1.msra.mxu0 0.0
        %381 = vmatprep.subr.mxu0 0.0
        %382 = vmatpush1.msra.mxu0 0.0
        %383 = vmatprep.subr.mxu0 0.0
        %384 = vmatpush1.msra.mxu0 0.0
        %385 = vmatprep.subr.mxu0 0.0
        %386 = vmatpush1.msra.mxu0 0.0
        %387 = vmatprep.subr.mxu0 0.0
        %388 = vmatpush1.msra.mxu0 0.0
        %389 = vmatprep.subr.mxu0 0.0
        %390 = vmatpush1.msra.mxu0 0.0
        %391 = vmatprep.subr.mxu0 0.0
        %392 = vmatpush1.msra.mxu0 0.0
        %393 = vmatprep.subr.mxu0 0.0
        %394 = vmatpush1.msra.mxu0 0.0
        %395 = vmatprep.subr.mxu0 0.0
        %396 = vmatpush1.msra.mxu0 0.0
        %397 = vmatprep.subr.mxu0 0.0
        %398 = vmatpush1.msra.mxu0 0.0
        %399 = vmatprep.subr.mxu0 0.0
        %400 = vmatpush1.msra.mxu0 0.0
        %401 = vmatprep.subr.mxu0 0.0
        %402 = vmatpush1.msra.mxu0 0.0
        %403 = vmatprep.subr.mxu0 0.0
        %404 = vmatpush1.msra.mxu0 0.0
        %405 = vmatprep.subr.mxu0 0.0
        %406 = vmatpush1.msra.mxu0 0.0
        %407 = vmatprep.subr.mxu0 0.0
        %408 = vmatpush1.msra.mxu0 0.0
        %409 = vmatprep.subr.mxu0 0.0
        %410 = vmatpush1.msra.mxu0 0.0
        %411 = vmatprep.subr.mxu0 0.0
        %412 = vmatpush1.msra.mxu0 0.0
        %413 = vmatprep.subr.mxu0 0.0
        %414 = vmatpush1.msra.mxu0 0.0
        %415 = vmatprep.subr.mxu0 0.0
        %416 = vmatpush1.msra.mxu0 0.0
        %417 = vmatprep.subr.mxu0 0.0
        %418 = vmatpush1.msra.mxu0 0.0
        %419 = vmatprep.subr.mxu0 0.0
        %420 = vmatpush1.msra.mxu0 0.0
        %421 = vmatprep.subr.mxu0 0.0
        %422 = vmatpush1.msra.mxu0 0.0
        %423 = vmatprep.subr.mxu0 0.0
        %424 = vmatpush1.msra.mxu0 0.0
        %425 = vmatprep.subr.mxu0 0.0
        %426 = vmatpush1.msra.mxu0 0.0
        %427 = vmatprep.subr.mxu0 0.0
        %428 = vmatpush1.msra.mxu0 0.0
        %429 = vmatprep.subr.mxu0 0.0
        %430 = vmatpush1.msra.mxu0 0.0
        %431 = vmatprep.mubr.f32.mxu0 0.0
        %432 = vmatmul.mubr.f32.gmra.mrb[0].mxu0 %v365
        %v433 = vpop.f32.mrb[0].mxu0
        %v434 = vadd.f32 0.0, %v433
        %v435 = vpop.f32.mrb[0].mxu0
        %436 = vdwg.mxu0
        %v437 = vsub.f32 0.0, %v434
        %v438 = vmax.f32 %v434, 1e-30
        %v439 = vrcp.pop %v438
        %441 = vrot.lane.b32.xlu0 %v439, 1
        %v442 = vpop.permute.xlu0 %441
        %v444 = vmul.f32 %v437, %v442
        %v445 = vmul.f32 %v444, %v444
        %v446 = vsub.f32 1.0, %v445
        %448 = vrot.lane.b32.xlu0 %v446, 127
        %v449 = vpop.permute.xlu0 %448
        %v451 = vmul.f32 %v434, %v449
        %v452 = vmul.f32 %v444, %v434
        %454 = vrot.lane.b32.xlu0 %v452, 1
        %v455 = vpop.permute.xlu0 %454
        %v457 = vadd.f32 %v434, %v455
        %v458 = vsub.f32 0.0, %v457
        %v459 = vmax.f32 %v451, 1e-30
        %v460 = vrcp.pop %v459
        %462 = vrot.lane.b32.xlu0 %v460, 2
        %v463 = vpop.permute.xlu0 %462
        %v465 = vmul.f32 %v458, %v463
        %467 = vrot.lane.b32.xlu0 %v444, 1
        %v468 = vpop.permute.xlu0 %467
        %v470 = vmul.f32 %v465, %v468
        %472 = vrot.lane.b32.xlu0 %v470, 127
        %v473 = vpop.permute.xlu0 %472
        %v475 = vadd.f32 %v444, %v473
        %v476 = vmul.f32 %v465, %v465
        %v477 = vsub.f32 1.0, %v476
        %479 = vrot.lane.b32.xlu0 %v477, 126
        %v480 = vpop.permute.xlu0 %479
        %v482 = vmul.f32 %v451, %v480
        %484 = vrot.lane.b32.xlu0 %v434, 127
        %v485 = vpop.permute.xlu0 %484
        %v487 = vmul.f32 %v475, %v485
        %489 = vrot.lane.b32.xlu0 %v487, 2
        %v490 = vpop.permute.xlu0 %489
        %v492 = vadd.f32 %v434, %v490
        %493 = vrot.lane.b32.xlu0 %v434, 1
        %v494 = vpop.permute.xlu0 %493
        %v496 = vmul.f32 %v465, %v494
        %498 = vrot.lane.b32.xlu0 %v496, 1
        %v499 = vpop.permute.xlu0 %498
        %v501 = vadd.f32 %v492, %v499
        %v502 = vsub.f32 0.0, %v501
        %v503 = vmax.f32 %v482, 1e-30
        %v504 = vrcp.pop %v503
        %506 = vrot.lane.b32.xlu0 %v504, 3
        %v507 = vpop.permute.xlu0 %506
        %v509 = vmul.f32 %v502, %v507
        %511 = vrot.lane.b32.xlu0 %v465, 1
        %v512 = vpop.permute.xlu0 %511
        %v514 = vmul.f32 %v509, %v512
        %516 = vrot.lane.b32.xlu0 %v514, 126
        %v517 = vpop.permute.xlu0 %516
        %v519 = vadd.f32 %v475, %v517
        %521 = vrot.lane.b32.xlu0 %v475, 2
        %v522 = vpop.permute.xlu0 %521
        %v524 = vmul.f32 %v509, %v522
        %526 = vrot.lane.b32.xlu0 %v524, 127
        %v527 = vpop.permute.xlu0 %526
        %v529 = vadd.f32 %v465, %v527
        %v530 = vmul.f32 %v509, %v509
        %v531 = vsub.f32 1.0, %v530
        %533 = vrot.lane.b32.xlu0 %v531, 125
        %v534 = vpop.permute.xlu0 %533
        %v536 = vmul.f32 %v482, %v534
        %537 = vrot.lane.b32.xlu0 %v434, 126
        %v538 = vpop.permute.xlu0 %537
        %v540 = vmul.f32 %v519, %v538
        %542 = vrot.lane.b32.xlu0 %v540, 3
        %v543 = vpop.permute.xlu0 %542
        %v545 = vadd.f32 %v434, %v543
        %v546 = vmul.f32 %v529, %v434
        %548 = vrot.lane.b32.xlu0 %v546, 2
        %v549 = vpop.permute.xlu0 %548
        %v551 = vadd.f32 %v545, %v549
        %552 = vrot.lane.b32.xlu0 %v434, 2
        %v553 = vpop.permute.xlu0 %552
        %v555 = vmul.f32 %v509, %v553
        %557 = vrot.lane.b32.xlu0 %v555, 1
        %v558 = vpop.permute.xlu0 %557
        %v560 = vadd.f32 %v551, %v558
        %v561 = vsub.f32 0.0, %v560
        %v562 = vmax.f32 %v536, 1e-30
        %v563 = vrcp.pop %v562
        %565 = vrot.lane.b32.xlu0 %v563, 4
        %v566 = vpop.permute.xlu0 %565
        %v568 = vmul.f32 %v561, %v566
        %570 = vrot.lane.b32.xlu0 %v509, 1
        %v571 = vpop.permute.xlu0 %570
        %v573 = vmul.f32 %v568, %v571
        %575 = vrot.lane.b32.xlu0 %v573, 125
        %v576 = vpop.permute.xlu0 %575
        %v578 = vadd.f32 %v519, %v576
        %580 = vrot.lane.b32.xlu0 %v529, 2
        %v581 = vpop.permute.xlu0 %580
        %v583 = vmul.f32 %v568, %v581
        %585 = vrot.lane.b32.xlu0 %v583, 126
        %v586 = vpop.permute.xlu0 %585
        %v588 = vadd.f32 %v529, %v586
        %590 = vrot.lane.b32.xlu0 %v519, 3
        %v591 = vpop.permute.xlu0 %590
        %v593 = vmul.f32 %v568, %v591
        %595 = vrot.lane.b32.xlu0 %v593, 127
        %v596 = vpop.permute.xlu0 %595
        %v598 = vadd.f32 %v509, %v596
        %vm599 = vcmask 7168
        %v600 = vsel %vm599, 1.0, %v578
        %vm601 = vcmask 15360
        %v602 = vsel %vm601, %v600, %v588
        %vm603 = vcmask 23552
        %v604 = vsel %vm603, %v602, %v598
        %vm605 = vcmask 31744
        %v606 = vsel %vm605, %v604, %v568
        %v607 = vld [vmem:[%s4] sm:$0x1f]
        %v608 = vld [vmem:[%s4 + $0x8] sm:$0x1f]
        %v609 = vld [vmem:[%s4 + $0x10] sm:$0x1f]
        %v610 = vld [vmem:[%s4 + $0x18] sm:$0x1f]
        %v611 = vld [vmem:[%s4 + $0x20] sm:$0x1f]
        %v612 = vld [vmem:[%s4 + $0x28] sm:$0x1f]
        %v613 = vld [vmem:[%s4 + $0x30] sm:$0x1f]
        %v614 = vld [vmem:[%s4 + $0x38] sm:$0x1f]
        %vm615 = vcmask 39936
        %v617 = vsel %vm615, %v606, 0
        %vm619 = vcmask 1044480
        %v621 = vsel %vm619, %v607, 0
        %v624 = vsel %vm619, %v608, 0
        %v627 = vsel %vm619, %v609, 0
        %v630 = vsel %vm619, %v610, 0
        %v633 = vsel %vm619, %v611, 0
        %v636 = vsel %vm619, %v612, 0
        %v639 = vsel %vm619, %v613, 0
        %v642 = vsel %vm619, %v614, 0
        %644 = vmatprep.subr.mxu0 %v624
        %645 = vmatpush1.msra.mxu0 %v621
        %646 = vmatprep.subr.mxu0 0.0
        %647 = vmatpush1.msra.mxu0 0.0
        %648 = vmatprep.subr.mxu0 0.0
        %649 = vmatpush1.msra.mxu0 0.0
        %650 = vmatprep.subr.mxu0 0.0
        %651 = vmatpush1.msra.mxu0 0.0
        %652 = vmatprep.subr.mxu0 0.0
        %653 = vmatpush1.msra.mxu0 0.0
        %654 = vmatprep.subr.mxu0 0.0
        %655 = vmatpush1.msra.mxu0 0.0
        %656 = vmatprep.subr.mxu0 0.0
        %657 = vmatpush1.msra.mxu0 0.0
        %658 = vmatprep.subr.mxu0 0.0
        %659 = vmatpush1.msra.mxu0 0.0
        %660 = vmatprep.subr.mxu0 0.0
        %661 = vmatpush1.msra.mxu0 0.0
        %662 = vmatprep.subr.mxu0 0.0
        %663 = vmatpush1.msra.mxu0 0.0
        %664 = vmatprep.subr.mxu0 0.0
        %665 = vmatpush1.msra.mxu0 0.0
        %666 = vmatprep.subr.mxu0 0.0
        %667 = vmatpush1.msra.mxu0 0.0
        %668 = vmatprep.subr.mxu0 0.0
        %669 = vmatpush1.msra.mxu0 0.0
        %670 = vmatprep.subr.mxu0 0.0
        %671 = vmatpush1.msra.mxu0 0.0
        %672 = vmatprep.subr.mxu0 0.0
        %673 = vmatpush1.msra.mxu0 0.0
        %674 = vmatprep.subr.mxu0 0.0
        %675 = vmatpush1.msra.mxu0 0.0
        %676 = vmatprep.subr.mxu0 0.0
        %677 = vmatpush1.msra.mxu0 0.0
        %678 = vmatprep.subr.mxu0 0.0
        %679 = vmatpush1.msra.mxu0 0.0
        %680 = vmatprep.subr.mxu0 0.0
        %681 = vmatpush1.msra.mxu0 0.0
        %682 = vmatprep.subr.mxu0 0.0
        %683 = vmatpush1.msra.mxu0 0.0
        %684 = vmatprep.subr.mxu0 0.0
        %685 = vmatpush1.msra.mxu0 0.0
        %686 = vmatprep.subr.mxu0 0.0
        %687 = vmatpush1.msra.mxu0 0.0
        %688 = vmatprep.subr.mxu0 0.0
        %689 = vmatpush1.msra.mxu0 0.0
        %690 = vmatprep.subr.mxu0 0.0
        %691 = vmatpush1.msra.mxu0 0.0
        %692 = vmatprep.subr.mxu0 0.0
        %693 = vmatpush1.msra.mxu0 0.0
        %694 = vmatprep.subr.mxu0 0.0
        %695 = vmatpush1.msra.mxu0 0.0
        %696 = vmatprep.subr.mxu0 0.0
        %697 = vmatpush1.msra.mxu0 0.0
        %698 = vmatprep.subr.mxu0 0.0
        %699 = vmatpush1.msra.mxu0 0.0
        %700 = vmatprep.subr.mxu0 0.0
        %701 = vmatpush1.msra.mxu0 0.0
        %702 = vmatprep.subr.mxu0 0.0
        %703 = vmatpush1.msra.mxu0 0.0
        %704 = vmatprep.subr.mxu0 0.0
        %705 = vmatpush1.msra.mxu0 0.0
        %706 = vmatprep.subr.mxu0 0.0
        %707 = vmatpush1.msra.mxu0 0.0
        %708 = vmatprep.mubr.f32.mxu0 0.0
        %709 = vmatmul.mubr.f32.gmra.mrb[0].mxu0 %v617
        %v710 = vpop.f32.mrb[0].mxu0
        %v711 = vadd.f32 0.0, %v710
        %v712 = vpop.f32.mrb[0].mxu0
        %v713 = vadd.f32 0.0, %v712
        %714 = vdwg.mxu0
        %715 = vmatprep.subr.mxu0 %v630
        %716 = vmatpush1.msra.mxu0 %v627
        %717 = vmatprep.subr.mxu0 0.0
        %718 = vmatpush1.msra.mxu0 0.0
        %719 = vmatprep.subr.mxu0 0.0
        %720 = vmatpush1.msra.mxu0 0.0
        %721 = vmatprep.subr.mxu0 0.0
        %722 = vmatpush1.msra.mxu0 0.0
        %723 = vmatprep.subr.mxu0 0.0
        %724 = vmatpush1.msra.mxu0 0.0
        %725 = vmatprep.subr.mxu0 0.0
        %726 = vmatpush1.msra.mxu0 0.0
        %727 = vmatprep.subr.mxu0 0.0
        %728 = vmatpush1.msra.mxu0 0.0
        %729 = vmatprep.subr.mxu0 0.0
        %730 = vmatpush1.msra.mxu0 0.0
        %731 = vmatprep.subr.mxu0 0.0
        %732 = vmatpush1.msra.mxu0 0.0
        %733 = vmatprep.subr.mxu0 0.0
        %734 = vmatpush1.msra.mxu0 0.0
        %735 = vmatprep.subr.mxu0 0.0
        %736 = vmatpush1.msra.mxu0 0.0
        %737 = vmatprep.subr.mxu0 0.0
        %738 = vmatpush1.msra.mxu0 0.0
        %739 = vmatprep.subr.mxu0 0.0
        %740 = vmatpush1.msra.mxu0 0.0
        %741 = vmatprep.subr.mxu0 0.0
        %742 = vmatpush1.msra.mxu0 0.0
        %743 = vmatprep.subr.mxu0 0.0
        %744 = vmatpush1.msra.mxu0 0.0
        %745 = vmatprep.subr.mxu0 0.0
        %746 = vmatpush1.msra.mxu0 0.0
        %747 = vmatprep.subr.mxu0 0.0
        %748 = vmatpush1.msra.mxu0 0.0
        %749 = vmatprep.subr.mxu0 0.0
        %750 = vmatpush1.msra.mxu0 0.0
        %751 = vmatprep.subr.mxu0 0.0
        %752 = vmatpush1.msra.mxu0 0.0
        %753 = vmatprep.subr.mxu0 0.0
        %754 = vmatpush1.msra.mxu0 0.0
        %755 = vmatprep.subr.mxu0 0.0
        %756 = vmatpush1.msra.mxu0 0.0
        %757 = vmatprep.subr.mxu0 0.0
        %758 = vmatpush1.msra.mxu0 0.0
        %759 = vmatprep.subr.mxu0 0.0
        %760 = vmatpush1.msra.mxu0 0.0
        %761 = vmatprep.subr.mxu0 0.0
        %762 = vmatpush1.msra.mxu0 0.0
        %763 = vmatprep.subr.mxu0 0.0
        %764 = vmatpush1.msra.mxu0 0.0
        %765 = vmatprep.subr.mxu0 0.0
        %766 = vmatpush1.msra.mxu0 0.0
        %767 = vmatprep.subr.mxu0 0.0
        %768 = vmatpush1.msra.mxu0 0.0
        %769 = vmatprep.subr.mxu0 0.0
        %770 = vmatpush1.msra.mxu0 0.0
        %771 = vmatprep.subr.mxu0 0.0
        %772 = vmatpush1.msra.mxu0 0.0
        %773 = vmatprep.subr.mxu0 0.0
        %774 = vmatpush1.msra.mxu0 0.0
        %775 = vmatprep.subr.mxu0 0.0
        %776 = vmatpush1.msra.mxu0 0.0
        %777 = vmatprep.subr.mxu0 0.0
        %778 = vmatpush1.msra.mxu0 0.0
        %779 = vmatprep.mubr.f32.mxu0 0.0
        %780 = vmatmul.mubr.f32.gmra.mrb[0].mxu0 %v617
        %v781 = vpop.f32.mrb[0].mxu0
        %v782 = vadd.f32 0.0, %v781
        %v783 = vpop.f32.mrb[0].mxu0
        %v784 = vadd.f32 0.0, %v783
        %785 = vdwg.mxu0
        %786 = vmatprep.subr.mxu0 %v636
        %787 = vmatpush1.msra.mxu0 %v633
        %788 = vmatprep.subr.mxu0 0.0
        %789 = vmatpush1.msra.mxu0 0.0
        %790 = vmatprep.subr.mxu0 0.0
        %791 = vmatpush1.msra.mxu0 0.0
        %792 = vmatprep.subr.mxu0 0.0
        %793 = vmatpush1.msra.mxu0 0.0
        %794 = vmatprep.subr.mxu0 0.0
        %795 = vmatpush1.msra.mxu0 0.0
        %796 = vmatprep.subr.mxu0 0.0
        %797 = vmatpush1.msra.mxu0 0.0
        %798 = vmatprep.subr.mxu0 0.0
        %799 = vmatpush1.msra.mxu0 0.0
        %800 = vmatprep.subr.mxu0 0.0
        %801 = vmatpush1.msra.mxu0 0.0
        %802 = vmatprep.subr.mxu0 0.0
        %803 = vmatpush1.msra.mxu0 0.0
        %804 = vmatprep.subr.mxu0 0.0
        %805 = vmatpush1.msra.mxu0 0.0
        %806 = vmatprep.subr.mxu0 0.0
        %807 = vmatpush1.msra.mxu0 0.0
        %808 = vmatprep.subr.mxu0 0.0
        %809 = vmatpush1.msra.mxu0 0.0
        %810 = vmatprep.subr.mxu0 0.0
        %811 = vmatpush1.msra.mxu0 0.0
        %812 = vmatprep.subr.mxu0 0.0
        %813 = vmatpush1.msra.mxu0 0.0
        %814 = vmatprep.subr.mxu0 0.0
        %815 = vmatpush1.msra.mxu0 0.0
        %816 = vmatprep.subr.mxu0 0.0
        %817 = vmatpush1.msra.mxu0 0.0
        %818 = vmatprep.subr.mxu0 0.0
        %819 = vmatpush1.msra.mxu0 0.0
        %820 = vmatprep.subr.mxu0 0.0
        %821 = vmatpush1.msra.mxu0 0.0
        %822 = vmatprep.subr.mxu0 0.0
        %823 = vmatpush1.msra.mxu0 0.0
        %824 = vmatprep.subr.mxu0 0.0
        %825 = vmatpush1.msra.mxu0 0.0
        %826 = vmatprep.subr.mxu0 0.0
        %827 = vmatpush1.msra.mxu0 0.0
        %828 = vmatprep.subr.mxu0 0.0
        %829 = vmatpush1.msra.mxu0 0.0
        %830 = vmatprep.subr.mxu0 0.0
        %831 = vmatpush1.msra.mxu0 0.0
        %832 = vmatprep.subr.mxu0 0.0
        %833 = vmatpush1.msra.mxu0 0.0
        %834 = vmatprep.subr.mxu0 0.0
        %835 = vmatpush1.msra.mxu0 0.0
        %836 = vmatprep.subr.mxu0 0.0
        %837 = vmatpush1.msra.mxu0 0.0
        %838 = vmatprep.subr.mxu0 0.0
        %839 = vmatpush1.msra.mxu0 0.0
        %840 = vmatprep.subr.mxu0 0.0
        %841 = vmatpush1.msra.mxu0 0.0
        %842 = vmatprep.subr.mxu0 0.0
        %843 = vmatpush1.msra.mxu0 0.0
        %844 = vmatprep.subr.mxu0 0.0
        %845 = vmatpush1.msra.mxu0 0.0
        %846 = vmatprep.subr.mxu0 0.0
        %847 = vmatpush1.msra.mxu0 0.0
        %848 = vmatprep.subr.mxu0 0.0
        %849 = vmatpush1.msra.mxu0 0.0
        %850 = vmatprep.mubr.f32.mxu0 0.0
        %851 = vmatmul.mubr.f32.gmra.mrb[0].mxu0 %v617
        %v852 = vpop.f32.mrb[0].mxu0
        %v853 = vadd.f32 0.0, %v852
        %v854 = vpop.f32.mrb[0].mxu0
        %v855 = vadd.f32 0.0, %v854
        %856 = vdwg.mxu0
        %857 = vmatprep.subr.mxu0 %v642
        %858 = vmatpush1.msra.mxu0 %v639
        %859 = vmatprep.subr.mxu0 0.0
        %860 = vmatpush1.msra.mxu0 0.0
        %861 = vmatprep.subr.mxu0 0.0
        %862 = vmatpush1.msra.mxu0 0.0
        %863 = vmatprep.subr.mxu0 0.0
        %864 = vmatpush1.msra.mxu0 0.0
        %865 = vmatprep.subr.mxu0 0.0
        %866 = vmatpush1.msra.mxu0 0.0
        %867 = vmatprep.subr.mxu0 0.0
        %868 = vmatpush1.msra.mxu0 0.0
        %869 = vmatprep.subr.mxu0 0.0
        %870 = vmatpush1.msra.mxu0 0.0
        %871 = vmatprep.subr.mxu0 0.0
        %872 = vmatpush1.msra.mxu0 0.0
        %873 = vmatprep.subr.mxu0 0.0
        %874 = vmatpush1.msra.mxu0 0.0
        %875 = vmatprep.subr.mxu0 0.0
        %876 = vmatpush1.msra.mxu0 0.0
        %877 = vmatprep.subr.mxu0 0.0
        %878 = vmatpush1.msra.mxu0 0.0
        %879 = vmatprep.subr.mxu0 0.0
        %880 = vmatpush1.msra.mxu0 0.0
        %881 = vmatprep.subr.mxu0 0.0
        %882 = vmatpush1.msra.mxu0 0.0
        %883 = vmatprep.subr.mxu0 0.0
        %884 = vmatpush1.msra.mxu0 0.0
        %885 = vmatprep.subr.mxu0 0.0
        %886 = vmatpush1.msra.mxu0 0.0
        %887 = vmatprep.subr.mxu0 0.0
        %888 = vmatpush1.msra.mxu0 0.0
        %889 = vmatprep.subr.mxu0 0.0
        %890 = vmatpush1.msra.mxu0 0.0
        %891 = vmatprep.subr.mxu0 0.0
        %892 = vmatpush1.msra.mxu0 0.0
        %893 = vmatprep.subr.mxu0 0.0
        %894 = vmatpush1.msra.mxu0 0.0
        %895 = vmatprep.subr.mxu0 0.0
        %896 = vmatpush1.msra.mxu0 0.0
        %897 = vmatprep.subr.mxu0 0.0
        %898 = vmatpush1.msra.mxu0 0.0
        %899 = vmatprep.subr.mxu0 0.0
        %900 = vmatpush1.msra.mxu0 0.0
        %901 = vmatprep.subr.mxu0 0.0
        %902 = vmatpush1.msra.mxu0 0.0
        %903 = vmatprep.subr.mxu0 0.0
        %904 = vmatpush1.msra.mxu0 0.0
        %905 = vmatprep.subr.mxu0 0.0
        %906 = vmatpush1.msra.mxu0 0.0
        %907 = vmatprep.subr.mxu0 0.0
        %908 = vmatpush1.msra.mxu0 0.0
        %909 = vmatprep.subr.mxu0 0.0
        %910 = vmatpush1.msra.mxu0 0.0
        %911 = vmatprep.subr.mxu0 0.0
        %912 = vmatpush1.msra.mxu0 0.0
        %913 = vmatprep.subr.mxu0 0.0
        %914 = vmatpush1.msra.mxu0 0.0
        %915 = vmatprep.subr.mxu0 0.0
        %916 = vmatpush1.msra.mxu0 0.0
        %917 = vmatprep.subr.mxu0 0.0
        %918 = vmatpush1.msra.mxu0 0.0
        %919 = vmatprep.subr.mxu0 0.0
        %920 = vmatpush1.msra.mxu0 0.0
        %921 = vmatprep.mubr.f32.mxu0 0.0
        %922 = vmatmul.mubr.f32.gmra.mrb[0].mxu0 %v617
        %v923 = vpop.f32.mrb[0].mxu0
        %v924 = vadd.f32 0.0, %v923
        %v925 = vpop.f32.mrb[0].mxu0
        %v926 = vadd.f32 0.0, %v925
        %927 = vdwg.mxu0
        %v928 = vmul.f32 %v711, %v711
        %v929 = vmul.f32 %v713, %v713
        %v930 = vmul.f32 %v782, %v782
        %v931 = vmul.f32 %v784, %v784
        %v932 = vmul.f32 %v853, %v853
        %v933 = vmul.f32 %v855, %v855
        %v934 = vmul.f32 %v924, %v924
        %v935 = vmul.f32 %v926, %v926
        %v936 = vadd.f32 %v928, %v932
        %v937 = vadd.f32 %v929, %v933
        %v938 = vadd.f32 %v930, %v934
        %v939 = vadd.f32 %v931, %v935
        %v940 = vadd.f32 %v936, 1e-30
        %v941 = vadd.f32 %v937, 1e-30
        %v942 = vadd.f32 %v938, 1e-30
        %v943 = vadd.f32 %v939, 1e-30
        %v944 = vlog2.pop %v940
        %v945 = vmul.f32 %v944, 0.6931472
        %v946 = vlog2.pop %v941
        %v947 = vmul.f32 %v946, 0.6931472
        %v948 = vlog2.pop %v942
        %v949 = vmul.f32 %v948, 0.6931472
        %v950 = vlog2.pop %v943
        %v951 = vmul.f32 %v950, 0.6931472
        %v952 = vld [vmem:[#allocation2] sm:$0xff]
        %v953 = vld [vmem:[#allocation2 + $0x8] sm:$0xff]
        %v954 = vld [vmem:[#allocation2 + $0x10] sm:$0xff]
        %v955 = vld [vmem:[#allocation2 + $0x18] sm:$0xff]
        %v956 = vld [vmem:[#allocation2 + $0x20] sm:$0xff]
        %v957 = vld [vmem:[#allocation2 + $0x28] sm:$0xff]
        %v958 = vld [vmem:[#allocation2 + $0x30] sm:$0xff]
        %v959 = vld [vmem:[#allocation2 + $0x38] sm:$0xff]
        %v960 = vld [vmem:[#allocation2 + $0x40] sm:$0xff]
        %v961 = vld [vmem:[#allocation2 + $0x48] sm:$0xff]
        %v962 = vld [vmem:[#allocation2 + $0x50] sm:$0xff]
        %v963 = vld [vmem:[#allocation2 + $0x58] sm:$0xff]
        %v964 = vld [vmem:[#allocation2 + $0x60] sm:$0xff]
        %v965 = vld [vmem:[#allocation2 + $0x68] sm:$0xff]
        %v966 = vld [vmem:[#allocation2 + $0x70] sm:$0xff]
        %v967 = vld [vmem:[#allocation2 + $0x78] sm:$0xff]
        %v968 = vld [vmem:[#allocation2 + $0x80] sm:$0xff]
        %v969 = vld [vmem:[#allocation2 + $0x88] sm:$0xff]
        %v970 = vld [vmem:[#allocation2 + $0x90] sm:$0xff]
        %v971 = vld [vmem:[#allocation2 + $0x98] sm:$0xff]
        %v972 = vld [vmem:[#allocation2 + $0xa0] sm:$0xff]
        %v973 = vld [vmem:[#allocation2 + $0xa8] sm:$0xff]
        %v974 = vld [vmem:[#allocation2 + $0xb0] sm:$0xff]
        %v975 = vld [vmem:[#allocation2 + $0xb8] sm:$0xff]
        %v976 = vld [vmem:[#allocation2 + $0xc0] sm:$0xff]
        %v977 = vld [vmem:[#allocation2 + $0xc8] sm:$0xff]
        %v978 = vld [vmem:[#allocation2 + $0xd0] sm:$0xff]
        %v979 = vld [vmem:[#allocation2 + $0xd8] sm:$0xff]
        %v980 = vld [vmem:[#allocation2 + $0xe0] sm:$0xff]
        %v981 = vld [vmem:[#allocation2 + $0xe8] sm:$0xff]
        %v982 = vld [vmem:[#allocation2 + $0xf0] sm:$0xff]
        %v983 = vld [vmem:[#allocation2 + $0xf8] sm:$0xff]
        %v984 = vld [vmem:[#allocation2 + $0x100] sm:$0xff]
        %v985 = vld [vmem:[#allocation2 + $0x108] sm:$0xff]
        %v986 = vld [vmem:[#allocation2 + $0x110] sm:$0xff]
        %v987 = vld [vmem:[#allocation2 + $0x118] sm:$0xff]
        %v988 = vld [vmem:[#allocation2 + $0x120] sm:$0xff]
        %v989 = vld [vmem:[#allocation2 + $0x128] sm:$0xff]
        %v990 = vld [vmem:[#allocation2 + $0x130] sm:$0xff]
        %v991 = vld [vmem:[#allocation2 + $0x138] sm:$0xff]
        %v992 = vld [vmem:[#allocation2 + $0x140] sm:$0xff]
        %v993 = vld [vmem:[#allocation2 + $0x148] sm:$0xff]
        %v994 = vld [vmem:[#allocation2 + $0x150] sm:$0xff]
        %v995 = vld [vmem:[#allocation2 + $0x158] sm:$0xff]
        %v996 = vld [vmem:[#allocation2 + $0x160] sm:$0xff]
        %v997 = vld [vmem:[#allocation2 + $0x168] sm:$0xff]
        %v998 = vld [vmem:[#allocation2 + $0x170] sm:$0xff]
        %v999 = vld [vmem:[#allocation2 + $0x178] sm:$0xff]
        %v1000 = vld [vmem:[#allocation2 + $0x180] sm:$0xff]
        %v1001 = vld [vmem:[#allocation2 + $0x188] sm:$0xff]
        %v1002 = vld [vmem:[#allocation2 + $0x190] sm:$0xff]
        %v1003 = vld [vmem:[#allocation2 + $0x198] sm:$0xff]
        %v1004 = vld [vmem:[#allocation2 + $0x1a0] sm:$0xff]
        %v1005 = vld [vmem:[#allocation2 + $0x1a8] sm:$0xff]
        %v1006 = vld [vmem:[#allocation2 + $0x1b0] sm:$0xff]
        %v1007 = vld [vmem:[#allocation2 + $0x1b8] sm:$0xff]
        %v1008 = vld [vmem:[#allocation2 + $0x1c0] sm:$0xff]
        %v1009 = vld [vmem:[#allocation2 + $0x1c8] sm:$0xff]
        %v1010 = vld [vmem:[#allocation2 + $0x1d0] sm:$0xff]
        %v1011 = vld [vmem:[#allocation2 + $0x1d8] sm:$0xff]
        %v1012 = vld [vmem:[#allocation2 + $0x1e0] sm:$0xff]
        %v1013 = vld [vmem:[#allocation2 + $0x1e8] sm:$0xff]
        %v1014 = vld [vmem:[#allocation2 + $0x1f0] sm:$0xff]
        %v1015 = vld [vmem:[#allocation2 + $0x1f8] sm:$0xff]
        %1016 = vmatprep.subr.mxu0 0.0
        %1017 = vmatpush1.msra.mxu0 %v952
        %1018 = vmatprep.subr.mxu0 0.0
        %1019 = vmatpush1.msra.mxu0 %v953
        %1020 = vmatprep.subr.mxu0 0.0
        %1021 = vmatpush1.msra.mxu0 %v954
        %1022 = vmatprep.subr.mxu0 0.0
        %1023 = vmatpush1.msra.mxu0 %v955
        %1024 = vmatprep.subr.mxu0 0.0
        %1025 = vmatpush1.msra.mxu0 %v956
        %1026 = vmatprep.subr.mxu0 0.0
        %1027 = vmatpush1.msra.mxu0 %v957
        %1028 = vmatprep.subr.mxu0 0.0
        %1029 = vmatpush1.msra.mxu0 %v958
        %1030 = vmatprep.subr.mxu0 0.0
        %1031 = vmatpush1.msra.mxu0 %v959
        %1032 = vmatprep.subr.mxu0 0.0
        %1033 = vmatpush1.msra.mxu0 %v960
        %1034 = vmatprep.subr.mxu0 0.0
        %1035 = vmatpush1.msra.mxu0 %v961
        %1036 = vmatprep.subr.mxu0 0.0
        %1037 = vmatpush1.msra.mxu0 %v962
        %1038 = vmatprep.subr.mxu0 0.0
        %1039 = vmatpush1.msra.mxu0 %v963
        %1040 = vmatprep.subr.mxu0 0.0
        %1041 = vmatpush1.msra.mxu0 %v964
        %1042 = vmatprep.subr.mxu0 0.0
        %1043 = vmatpush1.msra.mxu0 %v965
        %1044 = vmatprep.subr.mxu0 0.0
        %1045 = vmatpush1.msra.mxu0 %v966
        %1046 = vmatprep.subr.mxu0 0.0
        %1047 = vmatpush1.msra.mxu0 %v967
        %1048 = vmatprep.subr.mxu0 0.0
        %1049 = vmatpush1.msra.mxu0 %v968
        %1050 = vmatprep.subr.mxu0 0.0
        %1051 = vmatpush1.msra.mxu0 %v969
        %1052 = vmatprep.subr.mxu0 0.0
        %1053 = vmatpush1.msra.mxu0 %v970
        %1054 = vmatprep.subr.mxu0 0.0
        %1055 = vmatpush1.msra.mxu0 %v971
        %1056 = vmatprep.subr.mxu0 0.0
        %1057 = vmatpush1.msra.mxu0 %v972
        %1058 = vmatprep.subr.mxu0 0.0
        %1059 = vmatpush1.msra.mxu0 %v973
        %1060 = vmatprep.subr.mxu0 0.0
        %1061 = vmatpush1.msra.mxu0 %v974
        %1062 = vmatprep.subr.mxu0 0.0
        %1063 = vmatpush1.msra.mxu0 %v975
        %1064 = vmatprep.subr.mxu0 0.0
        %1065 = vmatpush1.msra.mxu0 %v976
        %1066 = vmatprep.subr.mxu0 0.0
        %1067 = vmatpush1.msra.mxu0 %v977
        %1068 = vmatprep.subr.mxu0 0.0
        %1069 = vmatpush1.msra.mxu0 %v978
        %1070 = vmatprep.subr.mxu0 0.0
        %1071 = vmatpush1.msra.mxu0 %v979
        %1072 = vmatprep.subr.mxu0 0.0
        %1073 = vmatpush1.msra.mxu0 %v980
        %1074 = vmatprep.subr.mxu0 0.0
        %1075 = vmatpush1.msra.mxu0 %v981
        %1076 = vmatprep.subr.mxu0 0.0
        %1077 = vmatpush1.msra.mxu0 %v982
        %1078 = vmatprep.subr.mxu0 0.0
        %1079 = vmatpush1.msra.mxu0 %v983
        %1080 = vmatprep.mubr.f32.mxu0 %v947
        %1081 = vmatmul.mubr.f32.gmra.mrb[0].mxu0 %v945
        %v1082 = vpop.f32.mrb[0].mxu0
        %v1083 = vadd.f32 0.0, %v1082
        %v1084 = vpop.f32.mrb[0].mxu0
        %1085 = vdwg.mxu0
        %1086 = vmatprep.subr.mxu0 0.0
        %1087 = vmatpush1.msra.mxu0 %v984
        %1088 = vmatprep.subr.mxu0 0.0
        %1089 = vmatpush1.msra.mxu0 %v985
        %1090 = vmatprep.subr.mxu0 0.0
        %1091 = vmatpush1.msra.mxu0 %v986
        %1092 = vmatprep.subr.mxu0 0.0
        %1093 = vmatpush1.msra.mxu0 %v987
        %1094 = vmatprep.subr.mxu0 0.0
        %1095 = vmatpush1.msra.mxu0 %v988
        %1096 = vmatprep.subr.mxu0 0.0
        %1097 = vmatpush1.msra.mxu0 %v989
        %1098 = vmatprep.subr.mxu0 0.0
        %1099 = vmatpush1.msra.mxu0 %v990
        %1100 = vmatprep.subr.mxu0 0.0
        %1101 = vmatpush1.msra.mxu0 %v991
        %1102 = vmatprep.subr.mxu0 0.0
        %1103 = vmatpush1.msra.mxu0 %v992
        %1104 = vmatprep.subr.mxu0 0.0
        %1105 = vmatpush1.msra.mxu0 %v993
        %1106 = vmatprep.subr.mxu0 0.0
        %1107 = vmatpush1.msra.mxu0 %v994
        %1108 = vmatprep.subr.mxu0 0.0
        %1109 = vmatpush1.msra.mxu0 %v995
        %1110 = vmatprep.subr.mxu0 0.0
        %1111 = vmatpush1.msra.mxu0 %v996
        %1112 = vmatprep.subr.mxu0 0.0
        %1113 = vmatpush1.msra.mxu0 %v997
        %1114 = vmatprep.subr.mxu0 0.0
        %1115 = vmatpush1.msra.mxu0 %v998
        %1116 = vmatprep.subr.mxu0 0.0
        %1117 = vmatpush1.msra.mxu0 %v999
        %1118 = vmatprep.subr.mxu0 0.0
        %1119 = vmatpush1.msra.mxu0 %v1000
        %1120 = vmatprep.subr.mxu0 0.0
        %1121 = vmatpush1.msra.mxu0 %v1001
        %1122 = vmatprep.subr.mxu0 0.0
        %1123 = vmatpush1.msra.mxu0 %v1002
        %1124 = vmatprep.subr.mxu0 0.0
        %1125 = vmatpush1.msra.mxu0 %v1003
        %1126 = vmatprep.subr.mxu0 0.0
        %1127 = vmatpush1.msra.mxu0 %v1004
        %1128 = vmatprep.subr.mxu0 0.0
        %1129 = vmatpush1.msra.mxu0 %v1005
        %1130 = vmatprep.subr.mxu0 0.0
        %1131 = vmatpush1.msra.mxu0 %v1006
        %1132 = vmatprep.subr.mxu0 0.0
        %1133 = vmatpush1.msra.mxu0 %v1007
        %1134 = vmatprep.subr.mxu0 0.0
        %1135 = vmatpush1.msra.mxu0 %v1008
        %1136 = vmatprep.subr.mxu0 0.0
        %1137 = vmatpush1.msra.mxu0 %v1009
        %1138 = vmatprep.subr.mxu0 0.0
        %1139 = vmatpush1.msra.mxu0 %v1010
        %1140 = vmatprep.subr.mxu0 0.0
        %1141 = vmatpush1.msra.mxu0 %v1011
        %1142 = vmatprep.subr.mxu0 0.0
        %1143 = vmatpush1.msra.mxu0 %v1012
        %1144 = vmatprep.subr.mxu0 0.0
        %1145 = vmatpush1.msra.mxu0 %v1013
        %1146 = vmatprep.subr.mxu0 0.0
        %1147 = vmatpush1.msra.mxu0 %v1014
        %1148 = vmatprep.subr.mxu0 0.0
        %1149 = vmatpush1.msra.mxu0 %v1015
        %1150 = vmatprep.mubr.f32.mxu0 %v951
        %1151 = vmatmul.mubr.f32.gmra.mrb[0].mxu0 %v949
        %v1152 = vpop.f32.mrb[0].mxu0
        %v1153 = vadd.f32 %v1083, %v1152
        %v1154 = vpop.f32.mrb[0].mxu0
        %1155 = vdwg.mxu0
        %1156 = vst [vmem:[%s257] sm:$0xff] %v1153
        %s1157 = sand.u32 %s160, 1
        %s1158 = scalar_lea.sflag [#allocation4], %s1157
        %s1159 = sand.u32 %s160, 1
        %s1160 = smul.addr %s1159, 8
        %s1161 = scalar_lea.vmem [#allocation5], %s1160
        // Predicated region
        $region49: #{tpu_custom_call.1} parent=43 // pred_check
          %p1162 = pneg %p170
        $region50: #{tpu_custom_call.1} parent=43 // pred_check_branch
          %1164 = sbr.rel (%p1162) target = $region52
        $region51: #{tpu_custom_call.1} parent=43 // pred_region
          %s1166 = ssub.s32 128, 128
          %1167 = vsyncadd %s1158, %s1166
          %s1168 = smul.addr %s21, 128
          %s1169 = scalar_lea.hbm %s6, %s1168
          %s1171 = sshll.u32 %s1161, 4
          %s1172 = int_to_ptr.vmem [resolvable:$true] %s1171
          %1174 = dma.vmem_to_hbm [thread:$0]  %s1172, 128, %s1169, %s1158
        $region52: #{tpu_custom_call.1} parent=43 // pred_fallthru
          _
      $region44: #{tpu_custom_call.1} parent=5 // pred_fallthru
        _
      %p1175 = scmp.le.s32.totalorder 2, %s16
      // Predicated region
      $region53: #{tpu_custom_call.1} parent=5 // pred_check
        %p1176 = pneg %p1175
      $region54: #{tpu_custom_call.1} parent=5 // pred_check_branch
        %1178 = sbr.rel (%p1176) target = $region56
      $region55: #{tpu_custom_call.1} parent=5 // pred_region
        %s1179 = ssub.s32 %s16, 2
        // Predicated region
        $region57: #{tpu_custom_call.1} parent=55 // pred_check
          %p1180 = pneg %p176
        $region58: #{tpu_custom_call.1} parent=55 // pred_check_branch
          %1182 = sbr.rel (%p1180) target = $region60
        $region59: #{tpu_custom_call.1} parent=55 // pred_region
          %s1183 = sand.u32 %s161, 1
          %s1184 = scalar_lea.sflag [#allocation4], %s1183
          %s1185 = sand.u32 %s161, 1
          %s1186 = smul.addr %s1185, 8
          %s1187 = scalar_lea.vmem [#allocation5], %s1186
          %1188 = dma.done %s1184, 128
        $region60: #{tpu_custom_call.1} parent=55 // pred_fallthru
          _
      $region56: #{tpu_custom_call.1} parent=5 // pred_fallthru
        _
    $region6: #{tpu_custom_call.1} parent=1 // loop_footer
      %s20 = sadd.s32 1, %s16
    $region7: #{tpu_custom_call.1} parent=1 // loop_footer_branch
      %15 = sbr.rel target = $region3
    $region8: #{tpu_custom_call.1} parent=1 // loop_exit
      _
    %1189 = vsyncpa [#allocation3], 1
    %s1190 = scalar_lea.sflag [#allocation3], 1
    %1191 = vsyncpa %s1190, 1
    %1192 = vsyncpa [#allocation4], 1
    %s1193 = scalar_lea.sflag [#allocation4], 1
    %1194 = vsyncpa %s1193, 1

</llo_original>
